<compile_context>
chip_gen: v6e
topology: v6e:2x2x1
jax: 0.10.0
libtpu: 0.0.40
codegen_flags: <defaults>
</compile_context>

<pallas_src>
import functools

import jax
import jax.numpy as jnp
from jax import lax
from jax.experimental import pallas as pl
from jax.experimental.pallas import tpu as pltpu


def _csd_sum_loss_kernel(num_frames, frame_tile, pred_ref, tgt_ref, out_ref):
    # One grid step = one (batch group, frame tile).
    #   pred_ref: [Bb, C, Tt]   input dtype (f32/bf16), native [B, C, T] layout
    #   tgt_ref : [Bb, 1, Tt]   int32 class indices (lane-dense)
    #   out_ref : [1, 1, 1]     f32 per-batch-group partial sum (accumulator across ti)
    ti = pl.program_id(1)

    @pl.when(ti == 0)
    def _init():
        out_ref[...] = jnp.zeros_like(out_ref)

    x = pred_ref[...].astype(jnp.float32)       # [Bb, C, Tt] upcast in-register
    tgt = tgt_ref[...]                          # [Bb, 1, Tt] int32
    bb, c, tt = x.shape

    # numerically-stable log-sum-exp over the class (sublane) axis
    m = jnp.max(x, axis=1, keepdims=True)                                  # [Bb,1,Tt]
    lse = m + jnp.log(jnp.sum(jnp.exp(x - m), axis=1, keepdims=True))      # [Bb,1,Tt]

    # gather pred[target] via class-iota compare + select (full-width VPU op)
    cls_iota = lax.broadcasted_iota(jnp.int32, (bb, c, tt), 1)             # [Bb,C,Tt]
    picked = jnp.sum(jnp.where(cls_iota == tgt, x, 0.0),
                     axis=1, keepdims=True)                                # [Bb,1,Tt]

    # TODO(synk): out-of-range / negative target indices silently give picked=0
    # (loss becomes lse) instead of raising like torch CrossEntropyLoss; no
    # ignore_index support.
    per_frame = lse - picked                                               # [Bb,1,Tt]

    # mask the ragged frame tail (only generated when T % t_tile != 0)
    if num_frames % frame_tile != 0:
        frame_idx = ti * frame_tile + lax.broadcasted_iota(
            jnp.int32, per_frame.shape, 2)
        per_frame = jnp.where(frame_idx < num_frames, per_frame, 0.0)

    # single fused cross-lane reduction per step, accumulated into the resident
    # per-group output block
    out_ref[...] = out_ref[...] + jnp.sum(per_frame)


def _pick_tiles(batch, num_class, num_frames, itemsize, budget_bytes):
    """Byte-driven tiling: (batch rows per step, frame tile)."""
    # sublane pack granularity: 8 rows for f32, 16 for bf16, 32 for int8 --
    # this is what the (C, T) tile actually occupies in HBM/VMEM when C is small.
    pack = 8 * max(1, 4 // itemsize)
    c_pad = -(-num_class // pack) * pack

    t_full_pad = -(-num_frames // 128) * 128
    row128 = c_pad * 128 * itemsize                     # bytes / batch row / 128 frames
    n128 = max(1, budget_bytes // row128)
    if num_frames <= 128 or n128 * 128 >= t_full_pad:
        t_tile = num_frames                              # single full-extent frame block
    else:
        t_tile = n128 * 128                              # multiple of 128, <= num_frames

    # Group multiple batch rows per step only when one frame block already covers
    # all frames (otherwise the frame axis keeps the DMAs large on its own).
    bb = 1
    if t_tile == num_frames:
        row_bytes = c_pad * max(t_tile, 128) * itemsize
        max_rows = max(1, budget_bytes // max(1, row_bytes))
        for d in range(min(batch, max_rows), 0, -1):
            if batch % d == 0:
                bb = d
                break
    return bb, t_tile


def csd_sum_loss(pred_csd, target_csd, *, block_budget_bytes=8 * 1024 * 1024):
    """pred_csd: [B, num_class, num_frames] float (f32 or bf16), native layout.
       target_csd: [B, num_frames] (any int/float, truncated to class indices).
       returns: scalar f32 = sum(CE(reduction='none')(pred, target)) / B
    """
    b, num_class, num_frames = pred_csd.shape
    # Only the tiny target is touched in the wrapper: int cast + free reshape.
    # TODO(synk): when num_class < 8 (f32) / 16 (bf16) the [B,C,T] layout is
    # sublane-padded in HBM/VMEM; removing that padding requires the *producer*
    # to emit a [B*C, T] layout (a wrapper reshape here would just add a relayout copy).
    tgt = target_csd.astype(jnp.int32).reshape(b, 1, num_frames)

    bb, t_tile = _pick_tiles(b, num_class, num_frames,
                             pred_csd.dtype.itemsize, block_budget_bytes)
    num_groups = b // bb
    grid = (num_groups, pl.cdiv(num_frames, t_tile))

    partials = pl.pallas_call(
        functools.partial(_csd_sum_loss_kernel, num_frames, t_tile),
        out_shape=jax.ShapeDtypeStruct((num_groups, 1, 1), jnp.float32),
        grid=grid,
        in_specs=[
            pl.BlockSpec((bb, num_class, t_tile), lambda bi, ti: (bi, 0, ti)),
            pl.BlockSpec((bb, 1, t_tile), lambda bi, ti: (bi, 0, ti)),
        ],
        # one resident (1,1,1) partial-sum block per batch group -> batch axis can
        # be megacore-parallel; frame axis is the accumulation (arbitrary) axis.
        out_specs=pl.BlockSpec((1, 1, 1), lambda bi, ti: (bi, 0, 0)),
        compiler_params=pltpu.CompilerParams(
            dimension_semantics=("parallel", "arbitrary"),
            vmem_limit_bytes=40 * 1024 * 1024),
    )(pred_csd, tgt)

    return jnp.sum(partials) / jnp.float32(b)


def _reference(pred_csd, target_csd):
    # pure-JAX reference matching torch.nn.CrossEntropyLoss(reduction='none')
    b = pred_csd.shape[0]
    logp = jax.nn.log_softmax(pred_csd.astype(jnp.float32), axis=1)   # [B, C, T]
    tgt = target_csd.astype(jnp.int32)                                # [B, T]
    picked = jnp.take_along_axis(logp, tgt[:, None, :], axis=1)[:, 0, :]
    return jnp.sum(-picked) / b


if __name__ == "__main__":
    key = jax.random.PRNGKey(0)
    ks = jax.random.split(key, 6)

    # 1) small shape matching the module's forward: [B, num_class, num_frames]
    B, C, T = 2, 4, 16
    pred = jax.random.normal(ks[0], (B, C, T), dtype=jnp.float32)
    tgt = jax.random.randint(ks[1], (B, T), 0, C).astype(jnp.float32)
    out = jax.block_until_ready(csd_sum_loss(pred, tgt))
    ref = jax.block_until_ready(_reference(pred, tgt))
    assert jnp.allclose(out, ref, rtol=1e-5, atol=1e-4), (out, ref)

    # 2) ragged T (300) with a tiny forced budget -> multi-tile frame grid,
    #    exercises the cdiv grid + tail-lane mask + per-batch partial outputs
    B2, C2, T2 = 3, 5, 300
    pred2 = jax.random.normal(ks[2], (B2, C2, T2), dtype=jnp.float32)
    tgt2 = jax.random.randint(ks[3], (B2, T2), 0, C2)
    out2 = jax.block_until_ready(csd_sum_loss(pred2, tgt2, block_budget_bytes=8192))
    ref2 = jax.block_until_ready(_reference(pred2, tgt2))
    assert jnp.allclose(out2, ref2, rtol=1e-5, atol=1e-4), (out2, ref2)

    # 3) bf16 logits, batch-grouped blocks (whole T per step)
    B3, C3, T3 = 4, 6, 256
    pred3 = jax.random.normal(ks[4], (B3, C3, T3), dtype=jnp.bfloat16)
    tgt3 = jax.random.randint(ks[5], (B3, T3), 0, C3)
    out3 = jax.block_until_ready(csd_sum_loss(pred3, tgt3))
    ref3 = jax.block_until_ready(_reference(pred3, tgt3))
    assert jnp.allclose(out3, ref3, rtol=1e-3, atol=1e-2), (out3, ref3)

    print("KERNEL_OK")
</pallas_src>

<mosaic_0001>
module attributes {stable_mosaic.version = 11 : i64} {
  func.func @_csd_sum_loss_kernel(%arg0: i32, %arg1: i32, %arg2: memref<2x4x16xf32, #tpu.memory_space<vmem>>, %arg3: memref<2x1x16xi32, #tpu.memory_space<vmem>>, %arg4: memref<1x1x1xf32, #tpu.memory_space<vmem>>) attributes {dimension_semantics = [#tpu.dimension_semantics<parallel>, #tpu.dimension_semantics<arbitrary>], iteration_bounds = array<i64: 1, 1>, scalar_prefetch = 0 : i64, scratch_operands = 0 : i64, tpu.core_type = #tpu.core_type<tc>, window_params = [{transform_indices = @transform_0, window_bounds = array<i64: 2, 4, 16>}, {transform_indices = @transform_1, window_bounds = array<i64: 2, 1, 16>}, {transform_indices = @transform_2, window_bounds = array<i64: 1, 1, 1>}]} {
    %c0_i32 = arith.constant 0 : i32
    %0 = arith.cmpi eq, %arg1, %c0_i32 : i32
    %1 = arith.extui %0 : i1 to i32
    %c0_i32_0 = arith.constant 0 : i32
    %2 = arith.cmpi ne, %1, %c0_i32_0 : i32
    scf.if %2 {
      %cst_16 = arith.constant 0.000000e+00 : f32
      %30 = vector.broadcast %cst_16 : f32 to vector<1x1x1xf32>
      %c0_17 = arith.constant 0 : index
      %c0_18 = arith.constant 0 : index
      %c0_19 = arith.constant 0 : index
      %31 = vector.load %arg4[%c0_17, %c0_18, %c0_19] : memref<1x1x1xf32, #tpu.memory_space<vmem>>, vector<1x1x1xf32>
      tpu.vector_store %arg4[%c0_17, %c0_18, %c0_19], %30 {strides = array<i32>} : memref<1x1x1xf32, #tpu.memory_space<vmem>>, vector<1x1x1xf32>,
    } else {
    }
    %c0 = arith.constant 0 : index
    %c0_1 = arith.constant 0 : index
    %c0_2 = arith.constant 0 : index
    %3 = vector.load %arg2[%c0, %c0_1, %c0_2] : memref<2x4x16xf32, #tpu.memory_space<vmem>>, vector<2x4x16xf32>
    %c0_3 = arith.constant 0 : index
    %c0_4 = arith.constant 0 : index
    %c0_5 = arith.constant 0 : index
    %4 = vector.load %arg3[%c0_3, %c0_4, %c0_5] : memref<2x1x16xi32, #tpu.memory_space<vmem>>, vector<2x1x16xi32>
    %cst = arith.constant dense<0xFF800000> : vector<2x16xf32>
    %5 = vector.multi_reduction <maximumf>, %3, %cst [1] : vector<2x4x16xf32> to vector<2x16xf32>
    %6 = vector.shape_cast %5 : vector<2x16xf32> to vector<2x1x16xf32>
    %7 = vector.broadcast %6 : vector<2x1x16xf32> to vector<2x4x16xf32>
    %8 = arith.subf %3, %7 : vector<2x4x16xf32>
    %9 = math.exp %8 : vector<2x4x16xf32>
    %cst_6 = arith.constant dense<0.000000e+00> : vector<2x16xf32>
    %10 = vector.multi_reduction <add>, %9, %cst_6 [1] : vector<2x4x16xf32> to vector<2x16xf32>
    %11 = vector.shape_cast %10 : vector<2x16xf32> to vector<2x1x16xf32>
    %12 = math.log %11 : vector<2x1x16xf32>
    %13 = arith.addf %6, %12 : vector<2x1x16xf32>
    %14 = tpu.iota {dimensions = array<i32: 1>} : vector<2x4x16xi32>
    %15 = vector.broadcast %4 : vector<2x1x16xi32> to vector<2x4x16xi32>
    %16 = arith.cmpi eq, %14, %15 : vector<2x4x16xi32>
    %cst_7 = arith.constant 0.000000e+00 : f32
    %17 = vector.broadcast %cst_7 : f32 to vector<2x4x16xf32>
    %18 = arith.select %16, %3, %17 : vector<2x4x16xi1>, vector<2x4x16xf32>
    %cst_8 = arith.constant dense<0.000000e+00> : vector<2x16xf32>
    %19 = vector.multi_reduction <add>, %18, %cst_8 [1] : vector<2x4x16xf32> to vector<2x16xf32>
    %20 = vector.shape_cast %19 : vector<2x16xf32> to vector<2x1x16xf32>
    %21 = arith.subf %13, %20 : vector<2x1x16xf32>
    %c0_9 = arith.constant 0 : index
    %c0_10 = arith.constant 0 : index
    %c0_11 = arith.constant 0 : index
    %22 = vector.load %arg4[%c0_9, %c0_10, %c0_11] : memref<1x1x1xf32, #tpu.memory_space<vmem>>, vector<1x1x1xf32>
    %23 = vector.shape_cast %21 : vector<2x1x16xf32> to vector<1x2x1x16xf32>
    %cst_12 = arith.constant dense<0.000000e+00> : vector<1xf32>
    %24 = vector.multi_reduction <add>, %23, %cst_12 [1, 2, 3] : vector<1x2x1x16xf32> to vector<1xf32>
    %25 = vector.shape_cast %24 : vector<1xf32> to vector<1x1x1x1xf32>
    %26 = vector.extract %25[0, 0, 0, 0] : f32 from vector<1x1x1x1xf32>
    %27 = vector.broadcast %26 : f32 to vector<1x1x1xf32>
    %28 = arith.addf %22, %27 : vector<1x1x1xf32>
    %c0_13 = arith.constant 0 : index
    %c0_14 = arith.constant 0 : index
    %c0_15 = arith.constant 0 : index
    %29 = vector.load %arg4[%c0_13, %c0_14, %c0_15] : memref<1x1x1xf32, #tpu.memory_space<vmem>>, vector<1x1x1xf32>
    tpu.vector_store %arg4[%c0_13, %c0_14, %c0_15], %28 {strides = array<i32>} : memref<1x1x1xf32, #tpu.memory_space<vmem>>, vector<1x1x1xf32>,
    return
  }
  func.func @transform_0(%arg0: i32, %arg1: i32) -> (i32, i32, i32) {
    %c0_i32 = arith.constant 0 : i32
    %c0_i32_0 = arith.constant 0 : i32
    return %arg0, %c0_i32, %arg1 : i32, i32, i32
  }
  func.func @transform_1(%arg0: i32, %arg1: i32) -> (i32, i32, i32) {
    %c0_i32 = arith.constant 0 : i32
    %c0_i32_0 = arith.constant 0 : i32
    return %arg0, %c0_i32, %arg1 : i32, i32, i32
  }
  func.func @transform_2(%arg0: i32, %arg1: i32) -> (i32, i32, i32) {
    %c0_i32 = arith.constant 0 : i32
    %c0_i32_0 = arith.constant 0 : i32
    %c0_i32_1 = arith.constant 0 : i32
    return %arg0, %c0_i32, %c0_i32_0 : i32, i32, i32
  }
}

</mosaic_0001>

<llo_original>
// kernel: tpu_custom_call.1
$region0: #{tpu_custom_call.1}
  #allocation0 [shape = 'u32[]', space=smem, size = 0x4, offset = 0x4, fixed_abs, tag = 'smem constant byte address 0x4 - core index']
  #allocation1 [shape = 'u32[144,128]{1,0:T(1,128)}', space=vmem, size = 0x12000, scoped, tag = 'internal scratch']
  %s0 = inlined_call_operand.hbm [shape: f32[2,4,16], index: 0, kind: input, shape index: {}]
  %s1 = inlined_call_operand.hbm [shape: s32[2,1,16], index: 1, kind: input, shape index: {}]
  %s2 = inlined_call_operand.hbm [shape: f32[1,1,1], index: 2, kind: output, shape index: {}]
  %s3 = sld [smem:[#allocation0]]
  $region30: #{tpu_custom_call.1} parent=0
    _
  %s5 = ssub.s32 1, %s3
  %s6 = scalar_select 0, %s5, %s3
  $region1: #{tpu_custom_call.1} parent=0
    #allocation2 [shape = 'u8[4096]{0}', space=vmem, size = 0x1000, scoped, tag = 'input window, operand 0, single buffered']
    #allocation3 [shape = 's32[1]{0}', space=sflag, size = 0x4, scoped, tag = 'scoped memory for tpu_custom_call.1']
    #allocation4 [shape = 's32[1]{0}', space=sflag, size = 0x4, scoped, tag = 'scoped memory for tpu_custom_call.1']
    #allocation5 [shape = 'u8[1024]{0}', space=vmem, size = 0x400, scoped, tag = 'input window, operand 1, single buffered']
    #allocation6 [shape = 's32[1]{0}', space=sflag, size = 0x4, scoped, tag = 'scoped memory for tpu_custom_call.1']
    #allocation7 [shape = 'u8[512]{0}', space=vmem, size = 0x400, scoped, tag = 'output window, operand 0, single buffered']
    %7 = vsyncpa [#allocation3], 0
    %8 = vsyncpa [#allocation6], 0
    %9 = vsyncpa [#allocation4], 0
    // Predicated region
    $region2: #{tpu_custom_call.1} parent=1 // pred_check
      _
    $region3: #{tpu_custom_call.1} parent=1 // pred_check_branch
      %11 = sbr.rel (0) target = $region5
    $region4: #{tpu_custom_call.1} parent=1 // pred_region
      %s13 = ssub.s32 128, 128
      %14 = vsyncadd [#allocation3], %s13
      %s15 = sshll.u32 [#allocation2], 4
      %s16 = int_to_ptr.vmem [resolvable:$true] %s15
      %21 = dma.hbm_to_vmem [thread:$0]  %s0, 128, %s16, [#allocation3], 64, 64, 4
    $region5: #{tpu_custom_call.1} parent=1 // pred_fallthru
      _
    // Predicated region
    $region6: #{tpu_custom_call.1} parent=1 // pred_check
      _
    $region7: #{tpu_custom_call.1} parent=1 // pred_check_branch
      %23 = sbr.rel (0) target = $region9
    $region8: #{tpu_custom_call.1} parent=1 // pred_region
      %s25 = ssub.s32 32, 32
      %26 = vsyncadd [#allocation6], %s25
      %s27 = sshll.u32 [#allocation5], 4
      %s28 = int_to_ptr.vmem [resolvable:$true] %s27
      %33 = dma.hbm_to_vmem [thread:$0]  %s1, 32, %s28, [#allocation6], 16, 16, 1
    $region9: #{tpu_custom_call.1} parent=1 // pred_fallthru
      _
    // Predicated region
    $region10: #{tpu_custom_call.1} parent=1 // pred_check
      _
    $region11: #{tpu_custom_call.1} parent=1 // pred_check_branch
      %35 = sbr.rel (0) target = $region13
    $region12: #{tpu_custom_call.1} parent=1 // pred_region
      %36 = dma.done [#allocation3], 128
    $region13: #{tpu_custom_call.1} parent=1 // pred_fallthru
      _
    // Predicated region
    $region14: #{tpu_custom_call.1} parent=1 // pred_check
      _
    $region15: #{tpu_custom_call.1} parent=1 // pred_check_branch
      %38 = sbr.rel (0) target = $region17
    $region16: #{tpu_custom_call.1} parent=1 // pred_region
      %39 = dma.done [#allocation6], 32
    $region17: #{tpu_custom_call.1} parent=1 // pred_fallthru
      _
    %p40 = scmp.eq.s32.totalorder 0, 0
    // Predicated region
    $region18: #{tpu_custom_call.1} parent=1 // pred_check
      %p41 = pneg %p40
    $region19: #{tpu_custom_call.1} parent=1 // pred_check_branch
      %43 = sbr.rel (%p41) target = $region21
    $region20: #{tpu_custom_call.1} parent=1 // pred_region
      %vm44 = vcmask 0
      %45 = vst.msk [vmem:[#allocation7] sm:$0x1] %vm44, 0.0
    $region21: #{tpu_custom_call.1} parent=1 // pred_fallthru
      _
    %v46 = vld [vmem:[#allocation2] sm:$0xf]
    %v47 = vld [vmem:[#allocation2 + $0x4] sm:$0xf]
    %v48 = vld [vmem:[#allocation5] sm:$0x1]
    %v49 = vld [vmem:[#allocation5 + $0x1] sm:$0x1]
    %vm50 = vcmask 125952
    %v51 = vsel %vm50, %v46, -inf
    %v52 = vrot.slane %v51, 4
    %v53 = vmax.f32 %v51, %v52
    %v54 = vrot.slane %v53, 2
    %v55 = vmax.f32 %v53, %v54
    %v56 = vrot.slane %v55, 1
    %v57 = vmax.f32 %v55, %v56
    %v58 = vsel %vm50, %v47, -inf
    %v59 = vrot.slane %v58, 4
    %v60 = vmax.f32 %v58, %v59
    %v61 = vrot.slane %v60, 2
    %v62 = vmax.f32 %v60, %v61
    %v63 = vrot.slane %v62, 1
    %v64 = vmax.f32 %v62, %v63
    %v65 = vsub.f32 %v46, %v57
    %v66 = vsub.f32 %v47, %v64
    %v67 = vmul.f32 %v65, 1.442695
    %v68 = vpow.pop %v67
    %v69 = vmul.f32 %v66, 1.442695
    %v70 = vpow.pop %v69
    %v71 = vsel %vm50, %v68, 0.0
    %v72 = vrot.slane %v71, 4
    %v73 = vadd.f32 %v71, %v72
    %v74 = vrot.slane %v73, 2
    %v75 = vadd.f32 %v73, %v74
    %v76 = vrot.slane %v75, 1
    %v77 = vadd.f32 %v75, %v76
    %v78 = vsel %vm50, %v70, 0.0
    %v79 = vrot.slane %v78, 4
    %v80 = vadd.f32 %v78, %v79
    %v81 = vrot.slane %v80, 2
    %v82 = vadd.f32 %v80, %v81
    %v83 = vrot.slane %v82, 1
    %v84 = vadd.f32 %v82, %v83
    %v85 = vlog2.pop %v77
    %v86 = vmul.f32 %v85, 0.6931472
    %v87 = vlog2.pop %v84
    %v88 = vmul.f32 %v87, 0.6931472
    %v89 = vadd.f32 %v57, %v86
    %v90 = vadd.f32 %v64, %v88
    %v91 = vlaneseq
    %v92 = vshrl.u32 %v91, 7
    %v93 = vlaneseq
    %v94 = vshrl.u32 %v93, 7
    %v95 = vsub.s32 0, %v94
    %v96 = vrot.slane %v48, %v95
    %v97 = vlaneseq
    %v98 = vshrl.u32 %v97, 7
    %v99 = vsub.s32 0, %v98
    %v100 = vrot.slane %v49, %v99
    %vm101 = vcmp.eq.s32.totalorder %v92, %v96
    %vm102 = vcmp.eq.s32.totalorder %v92, %v100
    %v103 = vsel %vm101, %v46, 0.0
    %v104 = vsel %vm102, %v47, 0.0
    %v105 = vsel %vm50, %v103, 0.0
    %v106 = vrot.slane %v105, 4
    %v107 = vadd.f32 %v105, %v106
    %v108 = vrot.slane %v107, 2
    %v109 = vadd.f32 %v107, %v108
    %v110 = vrot.slane %v109, 1
    %v111 = vadd.f32 %v109, %v110
    %v112 = vsel %vm50, %v104, 0.0
    %v113 = vrot.slane %v112, 4
    %v114 = vadd.f32 %v112, %v113
    %v115 = vrot.slane %v114, 2
    %v116 = vadd.f32 %v114, %v115
    %v117 = vrot.slane %v116, 1
    %v118 = vadd.f32 %v116, %v117
    %v119 = vsub.f32 %v89, %v111
    %v120 = vsub.f32 %v90, %v118
    %v121 = vld [vmem:[#allocation7] sm:$0x1]
    %vm122 = vcmask 122880
    %v123 = vsel %vm122, %v119, 0.0
    %v124 = vsel %vm122, %v120, 0.0
    %v125 = vadd.f32 %v123, %v124
    %126 = vadd.xlane.f32.xlu0 %v125
    %v127 = vpop.xlane.xlu0 %126
    %v128 = vrot.slane %v127, 4
    %v129 = vadd.f32 %v127, %v128
    %v130 = vrot.slane %v129, 2
    %v131 = vadd.f32 %v129, %v130
    %v132 = vrot.slane %v131, 1
    %v133 = vadd.f32 %v131, %v132
    %s134 = vtos %v133
    %v135 = vstv %s134
    %v136 = vadd.f32 %v121, %v135
    %vm137 = vcmask 0
    %138 = vst.msk [vmem:[#allocation7] sm:$0x1] %vm137, %v136
    // Predicated region
    $region22: #{tpu_custom_call.1} parent=1 // pred_check
      _
    $region23: #{tpu_custom_call.1} parent=1 // pred_check_branch
      %140 = sbr.rel (0) target = $region25
    $region24: #{tpu_custom_call.1} parent=1 // pred_region
      %s142 = ssub.s32 16, 16
      %143 = vsyncadd [#allocation4], %s142
      %s145 = sshll.u32 [#allocation7], 4
      %s146 = int_to_ptr.vmem [resolvable:$true] %s145
      %148 = dma.vmem_to_hbm [thread:$0]  %s146, 16, %s2, [#allocation4]
    $region25: #{tpu_custom_call.1} parent=1 // pred_fallthru
      _
    // Predicated region
    $region26: #{tpu_custom_call.1} parent=1 // pred_check
      _
    $region27: #{tpu_custom_call.1} parent=1 // pred_check_branch
      %150 = sbr.rel (0) target = $region29
    $region28: #{tpu_custom_call.1} parent=1 // pred_region
      %151 = dma.done [#allocation4], 16
    $region29: #{tpu_custom_call.1} parent=1 // pred_fallthru
      _
    %152 = vsyncpa [#allocation3], 1
    %153 = vsyncpa [#allocation6], 1
    %154 = vsyncpa [#allocation4], 1

</llo_original>
